<compile_context>
chip_gen: v6e
topology: v6e:2x2x1
jax: 0.10.0
libtpu: 0.0.40
codegen_flags: <defaults>
</compile_context>

<pallas_src>
import functools
from math import pi

import jax
import jax.numpy as jnp
from jax import lax
from jax.experimental import pallas as pl
from jax.experimental.pallas import tpu as pltpu


def _vdiffusion_kernel(x_ref, n_ref, alpha_ref, beta_ref, mask_ref, bias_ref,
                       w1_ref, w2_ref, b2_ref,
                       out_ref, acc_ref,
                       *, steps_per_split, tile_hw, hw_valid,
                       use_row_mask, use_lane_mask):
    s = pl.program_id(2)   # spatial step within the split (reduction axis)

    # init element-wise partial-sum accumulator at the start of each (pair, split)
    @pl.when(s == 0)
    def _():
        acc_ref[...] = jnp.zeros_like(acc_ref)

    x = x_ref[0]            # (rows, T): spatial on lanes, packed batches on sublanes
    noise = n_ref[0]
    alpha = alpha_ref[0]    # (rows, 1) per-row (per-batch) scalars
    beta = beta_ref[0]

    x_noisy = alpha * x + beta * noise
    v_target = alpha * noise - beta * x

    # synthetic per-pixel 2-layer MLP, block-diagonal over the packed batches,
    # transposed orientation so the big spatial dim stays on lanes.
    h = jnp.dot(w1_ref[...], x_noisy, preferred_element_type=jnp.float32)   # (hrows, T)
    h = jnp.tanh(h + bias_ref[0])              # bias = b1 + sigma*e, hoisted to wrapper
    v_pred = jnp.dot(w2_ref[...], h, preferred_element_type=jnp.float32) + b2_ref[...]

    diff = v_pred - v_target
    sq = diff * diff
    if use_row_mask:                            # zero out padded batch rows
        sq = sq * mask_ref[0]
    if use_lane_mask:                           # zero out padded spatial columns
        sp = pl.program_id(1)
        col0 = (sp * steps_per_split + s) * tile_hw
        col = col0 + lax.broadcasted_iota(jnp.int32, sq.shape, 1)
        sq = jnp.where(col < hw_valid, sq, 0.0)
    acc_ref[...] += sq                          # element-wise partials, no per-step reduce

    # finalize: single cross-lane reduce per (pair, split), lane-dense (8,128) store
    @pl.when(s == pl.num_programs(2) - 1)
    def _():
        out_ref[...] = jnp.full(out_ref.shape, jnp.sum(acc_ref[...]), dtype=out_ref.dtype)


def _pick_tile_hw(hw_pad, rows, hrows, *, budget_bytes=24 * 1024 * 1024, max_tile=65536):
    """Largest 128-multiple tile dividing hw_pad under a rough VMEM working-set budget."""
    # per spatial column (f32): 2 inputs x 2 pipeline buffers + acc + ~3 row-sized
    # temporaries, plus ~2 hidden-sized temporaries.
    per_col = 4 * (rows * 8 + hrows * 2)
    cap = (budget_bytes // per_col) // 128 * 128
    cap = max(128, min(cap, max_tile))
    if hw_pad <= cap:
        return hw_pad
    t = cap
    while t >= 128:
        if hw_pad % t == 0:
            return t
        t -= 128
    return 128  # unreachable: hw_pad is always a multiple of 128


def vdiffusion_loss(x_nchw, noise_nchw, sigmas, w1, b1, e, w2, b2,
                    *, tile_hw=None, nsplit=None):
    B, C, H, W = x_nchw.shape
    HW = H * W
    hidden = w1.shape[1]

    # pack batches so the C channel rows fill the 8 sublanes (C=4 -> 2 batches/block)
    pack = 8 // C if (C <= 8 and 8 % C == 0) else 1
    rows = pack * C
    hrows = pack * hidden

    B_pad = ((B + pack - 1) // pack) * pack
    HW_pad = ((HW + 127) // 128) * 128

    # NCHW-native view -- pure reshape, no transpose
    x_v = x_nchw.reshape(B, C, HW).astype(jnp.float32)
    n_v = noise_nchw.reshape(B, C, HW).astype(jnp.float32)
    if HW_pad != HW:
        padhw = ((0, 0), (0, 0), (0, HW_pad - HW))
        x_v = jnp.pad(x_v, padhw)
        n_v = jnp.pad(n_v, padhw)
    if B_pad != B:
        padb = ((0, B_pad - B), (0, 0), (0, 0))
        x_v = jnp.pad(x_v, padb)
        n_v = jnp.pad(n_v, padb)
    num_pairs = B_pad // pack
    x_v = x_v.reshape(num_pairs, rows, HW_pad)
    n_v = n_v.reshape(num_pairs, rows, HW_pad)

    # per-batch alpha/beta/mask and the hoisted sigma-conditioned bias (all tiny)
    sig = sigmas.astype(jnp.float32).reshape(B)
    sig_pad = jnp.pad(sig, (0, B_pad - B)) if B_pad != B else sig
    angle = sig_pad * (pi / 2.0)
    alphas = jnp.cos(angle)
    betas = jnp.sin(angle)

    alpha_p = jnp.repeat(alphas, C).reshape(num_pairs, rows, 1)
    beta_p = jnp.repeat(betas, C).reshape(num_pairs, rows, 1)
    valid = (jnp.arange(B_pad) < B).astype(jnp.float32)
    mask_p = jnp.repeat(valid, C).reshape(num_pairs, rows, 1)

    b1t = b1.astype(jnp.float32).reshape(hidden)
    e_t = e.astype(jnp.float32).reshape(hidden)
    bias_p = (b1t[None, :] + sig_pad[:, None] * e_t[None, :]).reshape(num_pairs, hrows, 1)

    # block-diagonal packed weights so the packed matmul is exact per-batch
    w1t = jnp.transpose(w1).astype(jnp.float32)                      # (hidden, C)
    w2t = jnp.transpose(w2).astype(jnp.float32)                      # (C, hidden)
    eye_p = jnp.eye(pack, dtype=jnp.float32)
    w1bd = jnp.kron(eye_p, w1t)                                      # (hrows, rows)
    w2bd = jnp.kron(eye_p, w2t)                                      # (rows, hrows)
    b2_p = jnp.tile(b2.astype(jnp.float32).reshape(C, 1), (pack, 1)) # (rows, 1)

    if tile_hw is None:
        tile_hw = _pick_tile_hw(HW_pad, rows, hrows)
    assert HW_pad % tile_hw == 0

    total_steps = HW_pad // tile_hw
    if nsplit is None:
        # give the second v7x TensorCore work when the batch-pair axis is short
        nsplit = 2 if (num_pairs % 2 == 1 and total_steps >= 2 and total_steps % 2 == 0) else 1
    assert total_steps % nsplit == 0
    steps = total_steps // nsplit

    use_row_mask = B_pad != B
    use_lane_mask = HW_pad != HW

    kern = functools.partial(
        _vdiffusion_kernel,
        steps_per_split=steps, tile_hw=tile_hw, hw_valid=HW,
        use_row_mask=use_row_mask, use_lane_mask=use_lane_mask)

    grid = (num_pairs, nsplit, steps)

    partials = pl.pallas_call(
        kern,
        out_shape=jax.ShapeDtypeStruct((num_pairs, nsplit, 8, 128), jnp.float32),
        grid_spec=pltpu.PrefetchScalarGridSpec(
            num_scalar_prefetch=0,
            grid=grid,
            in_specs=[
                pl.BlockSpec((1, rows, tile_hw),
                             lambda p, sp, s, _n=steps: (p, 0, sp * _n + s)),   # x (packed)
                pl.BlockSpec((1, rows, tile_hw),
                             lambda p, sp, s, _n=steps: (p, 0, sp * _n + s)),   # noise (packed)
                pl.BlockSpec((1, rows, 1), lambda p, sp, s: (p, 0, 0)),         # alpha per row
                pl.BlockSpec((1, rows, 1), lambda p, sp, s: (p, 0, 0)),         # beta per row
                pl.BlockSpec((1, rows, 1), lambda p, sp, s: (p, 0, 0)),         # row validity mask
                pl.BlockSpec((1, hrows, 1), lambda p, sp, s: (p, 0, 0)),        # b1 + sigma*e
                pl.BlockSpec((hrows, rows), lambda p, sp, s: (0, 0)),           # block-diag W1^T
                pl.BlockSpec((rows, hrows), lambda p, sp, s: (0, 0)),           # block-diag W2^T
                pl.BlockSpec((rows, 1), lambda p, sp, s: (0, 0)),               # b2^T (tiled)
            ],
            out_specs=pl.BlockSpec((1, 1, 8, 128), lambda p, sp, s: (p, sp, 0, 0)),
            scratch_shapes=[pltpu.VMEM((rows, tile_hw), jnp.float32)],
        ),
        compiler_params=pltpu.CompilerParams(
            dimension_semantics=("parallel", "parallel", "arbitrary"),
            vmem_limit_bytes=48 * 1024 * 1024,
        ),
    )(x_v, n_v, alpha_p, beta_p, mask_p, bias_p, w1bd, w2bd, b2_p)

    # F.mse_loss default reduction='mean'; every lane of each (pair, split) tile
    # holds that accumulator's total -> divide the full sum by 8*128*N.
    total_elems = float(B * C * H * W)
    return jnp.sum(partials) / (8.0 * 128.0 * total_elems)


def reference_loss(x_nchw, noise_nchw, sigmas, w1, b1, e, w2, b2):
    # pure-JAX reference of the same forward (for sanity)
    B, C, H, W = x_nchw.shape
    sig_b = sigmas.reshape(B, 1, 1, 1)
    alpha = jnp.cos(sig_b * pi / 2.0)
    beta = jnp.sin(sig_b * pi / 2.0)
    x_noisy = alpha * x_nchw + beta * noise_nchw
    v_target = alpha * noise_nchw - beta * x_nchw
    xr = jnp.transpose(x_noisy, (0, 2, 3, 1)).reshape(-1, C)
    sr = jnp.repeat(sigmas, H * W).reshape(-1, 1)
    h = jnp.tanh(xr @ w1 + b1 + sr * e)
    v_pred = (h @ w2 + b2).reshape(B, H, W, C).transpose(0, 3, 1, 2)
    return jnp.mean((v_pred - v_target) ** 2)


if __name__ == "__main__":
    B, C, H, W = 2, 4, 16, 16
    hidden = 32

    key = jax.random.PRNGKey(0)
    kx, kn, ks, k1, k2, k3, k4, k5 = jax.random.split(key, 8)

    x = jax.random.normal(kx, (B, C, H, W), dtype=jnp.float32)
    noise = jax.random.normal(kn, (B, C, H, W), dtype=jnp.float32)        # randn_like(x)
    sigmas = jax.random.uniform(ks, (B,), dtype=jnp.float32)              # UniformDistribution()

    # deterministic synthetic net parameters (stand-in for self.net)
    w1 = 0.1 * jax.random.normal(k1, (C, hidden), dtype=jnp.float32)
    b1 = 0.01 * jax.random.normal(k2, (1, hidden), dtype=jnp.float32)
    e = 0.1 * jax.random.normal(k3, (1, hidden), dtype=jnp.float32)
    w2 = 0.1 * jax.random.normal(k4, (hidden, C), dtype=jnp.float32)
    b2 = 0.01 * jax.random.normal(k5, (1, C), dtype=jnp.float32)

    loss = vdiffusion_loss(x, noise, sigmas, w1, b1, e, w2, b2)
    loss = jax.block_until_ready(loss)

    ref = reference_loss(x, noise, sigmas, w1, b1, e, w2, b2)
    assert jnp.allclose(loss, ref, rtol=1e-4, atol=1e-5), (loss, ref)

    print("KERNEL_OK")
</pallas_src>

<mosaic_0001>
module attributes {stable_mosaic.version = 11 : i64} {
  func.func @_vdiffusion_kernel(%arg0: i32, %arg1: i32, %arg2: i32, %arg3: memref<1x8x256xf32, #tpu.memory_space<vmem>>, %arg4: memref<1x8x256xf32, #tpu.memory_space<vmem>>, %arg5: memref<1x8x1xf32, #tpu.memory_space<vmem>>, %arg6: memref<1x8x1xf32, #tpu.memory_space<vmem>>, %arg7: memref<1x8x1xf32, #tpu.memory_space<vmem>>, %arg8: memref<1x64x1xf32, #tpu.memory_space<vmem>>, %arg9: memref<64x8xf32, #tpu.memory_space<vmem>>, %arg10: memref<8x64xf32, #tpu.memory_space<vmem>>, %arg11: memref<8x1xf32, #tpu.memory_space<vmem>>, %arg12: memref<1x1x8x128xf32, #tpu.memory_space<vmem>>, %arg13: memref<8x256xf32, #tpu.memory_space<vmem>>) attributes {dimension_semantics = [#tpu.dimension_semantics<parallel>, #tpu.dimension_semantics<parallel>, #tpu.dimension_semantics<arbitrary>], iteration_bounds = array<i64: 1, 1, 1>, scalar_prefetch = 0 : i64, scratch_operands = 1 : i64, tpu.core_type = #tpu.core_type<tc>, window_params = [{transform_indices = @transform_0, window_bounds = array<i64: 1, 8, 256>}, {transform_indices = @transform_1, window_bounds = array<i64: 1, 8, 256>}, {transform_indices = @transform_2, window_bounds = array<i64: 1, 8, 1>}, {transform_indices = @transform_3, window_bounds = array<i64: 1, 8, 1>}, {transform_indices = @transform_4, window_bounds = array<i64: 1, 8, 1>}, {transform_indices = @transform_5, window_bounds = array<i64: 1, 64, 1>}, {pipeline_mode = #tpu.pipeline_mode<synchronous>, transform_indices = @transform_6, window_bounds = array<i64: 64, 8>}, {pipeline_mode = #tpu.pipeline_mode<synchronous>, transform_indices = @transform_7, window_bounds = array<i64: 8, 64>}, {pipeline_mode = #tpu.pipeline_mode<synchronous>, transform_indices = @transform_8, window_bounds = array<i64: 8, 1>}, {transform_indices = @transform_9, window_bounds = array<i64: 1, 1, 8, 128>}]} {
    %c0_i32 = arith.constant 0 : i32
    %0 = arith.cmpi eq, %arg2, %c0_i32 : i32
    %1 = arith.extui %0 : i1 to i32
    %c0_i32_0 = arith.constant 0 : i32
    %2 = arith.cmpi ne, %1, %c0_i32_0 : i32
    scf.if %2 {
      %cst_28 = arith.constant 0.000000e+00 : f32
      %41 = vector.broadcast %cst_28 : f32 to vector<8x256xf32>
      %c0_29 = arith.constant 0 : index
      %c0_30 = arith.constant 0 : index
      %42 = vector.load %arg13[%c0_29, %c0_30] : memref<8x256xf32, #tpu.memory_space<vmem>>, vector<8x256xf32>
      tpu.vector_store %arg13[%c0_29, %c0_30], %41 {strides = array<i32>} : memref<8x256xf32, #tpu.memory_space<vmem>>, vector<8x256xf32>,
    } else {
    }
    %c0 = arith.constant 0 : index
    %c0_1 = arith.constant 0 : index
    %c0_2 = arith.constant 0 : index
    %3 = vector.load %arg3[%c0, %c0_1, %c0_2] : memref<1x8x256xf32, #tpu.memory_space<vmem>>, vector<1x8x256xf32>
    %4 = vector.shape_cast %3 : vector<1x8x256xf32> to vector<8x256xf32>
    %c0_3 = arith.constant 0 : index
    %c0_4 = arith.constant 0 : index
    %c0_5 = arith.constant 0 : index
    %5 = vector.load %arg4[%c0_3, %c0_4, %c0_5] : memref<1x8x256xf32, #tpu.memory_space<vmem>>, vector<1x8x256xf32>
    %6 = vector.shape_cast %5 : vector<1x8x256xf32> to vector<8x256xf32>
    %c0_6 = arith.constant 0 : index
    %c0_7 = arith.constant 0 : index
    %c0_8 = arith.constant 0 : index
    %7 = vector.load %arg5[%c0_6, %c0_7, %c0_8] : memref<1x8x1xf32, #tpu.memory_space<vmem>>, vector<1x8x1xf32>
    %8 = vector.shape_cast %7 : vector<1x8x1xf32> to vector<8x1xf32>
    %c0_9 = arith.constant 0 : index
    %c0_10 = arith.constant 0 : index
    %c0_11 = arith.constant 0 : index
    %9 = vector.load %arg6[%c0_9, %c0_10, %c0_11] : memref<1x8x1xf32, #tpu.memory_space<vmem>>, vector<1x8x1xf32>
    %10 = vector.shape_cast %9 : vector<1x8x1xf32> to vector<8x1xf32>
    %11 = vector.broadcast %8 : vector<8x1xf32> to vector<8x256xf32>
    %12 = arith.mulf %11, %4 : vector<8x256xf32>
    %13 = vector.broadcast %10 : vector<8x1xf32> to vector<8x256xf32>
    %14 = arith.mulf %13, %6 : vector<8x256xf32>
    %15 = arith.addf %12, %14 : vector<8x256xf32>
    %16 = vector.broadcast %8 : vector<8x1xf32> to vector<8x256xf32>
    %17 = arith.mulf %16, %6 : vector<8x256xf32>
    %18 = vector.broadcast %10 : vector<8x1xf32> to vector<8x256xf32>
    %19 = arith.mulf %18, %4 : vector<8x256xf32>
    %20 = arith.subf %17, %19 : vector<8x256xf32>
    %c0_12 = arith.constant 0 : index
    %c0_13 = arith.constant 0 : index
    %21 = vector.load %arg9[%c0_12, %c0_13] : memref<64x8xf32, #tpu.memory_space<vmem>>, vector<64x8xf32>
    %cst = arith.constant dense<0.000000e+00> : vector<64x256xf32>
    %22 = tpu.matmul %21, %15, %cst {dimension_numbers = #tpu.dot_dimension_numbers<[1], [0], [0], [1], [0, 0, 1, 1], [], []>} : vector<64x8xf32>, vector<8x256xf32>, vector<64x256xf32> -> vector<64x256xf32>
    %c0_14 = arith.constant 0 : index
    %c0_15 = arith.constant 0 : index
    %c0_16 = arith.constant 0 : index
    %23 = vector.load %arg8[%c0_14, %c0_15, %c0_16] : memref<1x64x1xf32, #tpu.memory_space<vmem>>, vector<1x64x1xf32>
    %24 = vector.shape_cast %23 : vector<1x64x1xf32> to vector<64x1xf32>
    %25 = vector.broadcast %24 : vector<64x1xf32> to vector<64x256xf32>
    %26 = arith.addf %22, %25 : vector<64x256xf32>
    %27 = math.tanh %26 : vector<64x256xf32>
    %c0_17 = arith.constant 0 : index
    %c0_18 = arith.constant 0 : index
    %28 = vector.load %arg10[%c0_17, %c0_18] : memref<8x64xf32, #tpu.memory_space<vmem>>, vector<8x64xf32>
    %cst_19 = arith.constant dense<0.000000e+00> : vector<8x256xf32>
    %29 = tpu.matmul %28, %27, %cst_19 {dimension_numbers = #tpu.dot_dimension_numbers<[1], [0], [0], [1], [0, 0, 1, 1], [], []>} : vector<8x64xf32>, vector<64x256xf32>, vector<8x256xf32> -> vector<8x256xf32>
    %c0_20 = arith.constant 0 : index
    %c0_21 = arith.constant 0 : index
    %30 = vector.load %arg11[%c0_20, %c0_21] : memref<8x1xf32, #tpu.memory_space<vmem>>, vector<8x1xf32>
    %31 = vector.broadcast %30 : vector<8x1xf32> to vector<8x256xf32>
    %32 = arith.addf %29, %31 : vector<8x256xf32>
    %33 = arith.subf %32, %20 : vector<8x256xf32>
    %34 = arith.mulf %33, %33 : vector<8x256xf32>
    %c0_22 = arith.constant 0 : index
    %c0_23 = arith.constant 0 : index
    %35 = vector.load %arg13[%c0_22, %c0_23] : memref<8x256xf32, #tpu.memory_space<vmem>>, vector<8x256xf32>
    %36 = arith.addf %35, %34 : vector<8x256xf32>
    %c0_24 = arith.constant 0 : index
    %c0_25 = arith.constant 0 : index
    %37 = vector.load %arg13[%c0_24, %c0_25] : memref<8x256xf32, #tpu.memory_space<vmem>>, vector<8x256xf32>
    tpu.vector_store %arg13[%c0_24, %c0_25], %36 {strides = array<i32>} : memref<8x256xf32, #tpu.memory_space<vmem>>, vector<8x256xf32>,
    %c0_i32_26 = arith.constant 0 : i32
    %38 = arith.cmpi eq, %arg2, %c0_i32_26 : i32
    %39 = arith.extui %38 : i1 to i32
    %c0_i32_27 = arith.constant 0 : i32
    %40 = arith.cmpi ne, %39, %c0_i32_27 : i32
    scf.if %40 {
      %c0_28 = arith.constant 0 : index
      %c0_29 = arith.constant 0 : index
      %41 = vector.load %arg13[%c0_28, %c0_29] : memref<8x256xf32, #tpu.memory_space<vmem>>, vector<8x256xf32>
      %42 = vector.shape_cast %41 : vector<8x256xf32> to vector<1x8x256xf32>
      %cst_30 = arith.constant dense<0.000000e+00> : vector<1xf32>
      %43 = vector.multi_reduction <add>, %42, %cst_30 [1, 2] : vector<1x8x256xf32> to vector<1xf32>
      %44 = vector.shape_cast %43 : vector<1xf32> to vector<1x1x1xf32>
      %45 = vector.extract %44[0, 0, 0] : f32 from vector<1x1x1xf32>
      %46 = vector.broadcast %45 : f32 to vector<1x1x8x128xf32>
      %c0_31 = arith.constant 0 : index
      %c0_32 = arith.constant 0 : index
      %c0_33 = arith.constant 0 : index
      %c0_34 = arith.constant 0 : index
      %47 = vector.load %arg12[%c0_31, %c0_32, %c0_33, %c0_34] : memref<1x1x8x128xf32, #tpu.memory_space<vmem>>, vector<1x1x8x128xf32>
      tpu.vector_store %arg12[%c0_31, %c0_32, %c0_33, %c0_34], %46 {strides = array<i32>} : memref<1x1x8x128xf32, #tpu.memory_space<vmem>>, vector<1x1x8x128xf32>,
    } else {
    }
    return
  }
  func.func @transform_0(%arg0: i32, %arg1: i32, %arg2: i32) -> (i32, i32, i32) {
    %c1_i32 = arith.constant 1 : i32
    %0 = arith.muli %arg1, %c1_i32 : i32
    %1 = arith.addi %0, %arg2 : i32
    %c0_i32 = arith.constant 0 : i32
    %c0_i32_0 = arith.constant 0 : i32
    return %arg0, %c0_i32, %1 : i32, i32, i32
  }
  func.func @transform_1(%arg0: i32, %arg1: i32, %arg2: i32) -> (i32, i32, i32) {
    %c1_i32 = arith.constant 1 : i32
    %0 = arith.muli %arg1, %c1_i32 : i32
    %1 = arith.addi %0, %arg2 : i32
    %c0_i32 = arith.constant 0 : i32
    %c0_i32_0 = arith.constant 0 : i32
    return %arg0, %c0_i32, %1 : i32, i32, i32
  }
  func.func @transform_2(%arg0: i32, %arg1: i32, %arg2: i32) -> (i32, i32, i32) {
    %c0_i32 = arith.constant 0 : i32
    %c0_i32_0 = arith.constant 0 : i32
    %c0_i32_1 = arith.constant 0 : i32
    return %arg0, %c0_i32, %c0_i32_0 : i32, i32, i32
  }
  func.func @transform_3(%arg0: i32, %arg1: i32, %arg2: i32) -> (i32, i32, i32) {
    %c0_i32 = arith.constant 0 : i32
    %c0_i32_0 = arith.constant 0 : i32
    %c0_i32_1 = arith.constant 0 : i32
    return %arg0, %c0_i32, %c0_i32_0 : i32, i32, i32
  }
  func.func @transform_4(%arg0: i32, %arg1: i32, %arg2: i32) -> (i32, i32, i32) {
    %c0_i32 = arith.constant 0 : i32
    %c0_i32_0 = arith.constant 0 : i32
    %c0_i32_1 = arith.constant 0 : i32
    return %arg0, %c0_i32, %c0_i32_0 : i32, i32, i32
  }
  func.func @transform_5(%arg0: i32, %arg1: i32, %arg2: i32) -> (i32, i32, i32) {
    %c0_i32 = arith.constant 0 : i32
    %c0_i32_0 = arith.constant 0 : i32
    %c0_i32_1 = arith.constant 0 : i32
    return %arg0, %c0_i32, %c0_i32_0 : i32, i32, i32
  }
  func.func @transform_6(%arg0: i32, %arg1: i32, %arg2: i32) -> (i32, i32) {
    %c0_i32 = arith.constant 0 : i32
    %c0_i32_0 = arith.constant 0 : i32
    %c0_i32_1 = arith.constant 0 : i32
    return %c0_i32, %c0_i32_0 : i32, i32
  }
  func.func @transform_7(%arg0: i32, %arg1: i32, %arg2: i32) -> (i32, i32) {
    %c0_i32 = arith.constant 0 : i32
    %c0_i32_0 = arith.constant 0 : i32
    %c0_i32_1 = arith.constant 0 : i32
    return %c0_i32, %c0_i32_0 : i32, i32
  }
  func.func @transform_8(%arg0: i32, %arg1: i32, %arg2: i32) -> (i32, i32) {
    %c0_i32 = arith.constant 0 : i32
    %c0_i32_0 = arith.constant 0 : i32
    %c0_i32_1 = arith.constant 0 : i32
    return %c0_i32, %c0_i32_0 : i32, i32
  }
  func.func @transform_9(%arg0: i32, %arg1: i32, %arg2: i32) -> (i32, i32, i32, i32) {
    %c0_i32 = arith.constant 0 : i32
    %c0_i32_0 = arith.constant 0 : i32
    %c0_i32_1 = arith.constant 0 : i32
    return %arg0, %arg1, %c0_i32, %c0_i32_0 : i32, i32, i32, i32
  }
}

</mosaic_0001>

<llo_original>
// kernel: tpu_custom_call.1
$region0: #{tpu_custom_call.1}
  #allocation0 [shape = 'u32[]', space=smem, size = 0x4, offset = 0x4, fixed_abs, tag = 'smem constant byte address 0x4 - core index']
  #allocation1 [shape = 'u32[144,128]{1,0:T(1,128)}', space=vmem, size = 0x12000, scoped, tag = 'internal scratch']
  #allocation2 [shape = 'f32[8,256]{1,0:T(8,128)}', space=vmem, size = 0x2000, scoped, tag = 'scratch operand']
  %s0 = inlined_call_operand.vmem [shape: f32[1,8,256], index: 0, kind: input, shape index: {}]
  %s1 = inlined_call_operand.vmem [shape: f32[1,8,256], index: 1, kind: input, shape index: {}]
  %s2 = inlined_call_operand.vmem [shape: f32[1,8,1], index: 2, kind: input, shape index: {}]
  %s3 = inlined_call_operand.vmem [shape: f32[1,8,1], index: 3, kind: input, shape index: {}]
  %s4 = inlined_call_operand.vmem [shape: f32[1,8,1], index: 4, kind: input, shape index: {}]
  %s5 = inlined_call_operand.vmem [shape: f32[1,64,1], index: 5, kind: input, shape index: {}]
  %s6 = inlined_call_operand.vmem [shape: f32[64,8], index: 6, kind: input, shape index: {}]
  %s7 = inlined_call_operand.vmem [shape: f32[8,64], index: 7, kind: input, shape index: {}]
  %s8 = inlined_call_operand.vmem [shape: f32[8,1], index: 8, kind: input, shape index: {}]
  %s9 = inlined_call_operand.hbm [shape: f32[1,1,8,128], index: 9, kind: output, shape index: {}]
  %s10 = sld [smem:[#allocation0]]
  $region54: #{tpu_custom_call.1} parent=0
    _
  %s12 = ssub.s32 1, %s10
  %s13 = scalar_select 0, %s12, %s10
  $region1: #{tpu_custom_call.1} parent=0
    #allocation3 [shape = 'u8[4096]{0}', space=vmem, size = 0x1000, scoped, tag = 'output window, operand 0, single buffered']
    #allocation4 [shape = 's32[1]{0}', space=sflag, size = 0x4, scoped, tag = 'scoped memory for tpu_custom_call.1']
    %14 = vsyncpa [#allocation4], 0
    // Predicated region
    $region2: #{tpu_custom_call.1} parent=1 // pred_check
      _
    $region3: #{tpu_custom_call.1} parent=1 // pred_check_branch
      %16 = sbr.rel (0) target = $region5
    $region4: #{tpu_custom_call.1} parent=1 // pred_region
      %s17 = sadd.s32 0, 0
      %s18 = smul.u32 2, %s17
      %p19 = scmp.lt.s32.totalorder %s18, 1
      %s20 = scalar_select %p19, %s18, 1
      %s21 = smul.addr %s20, 8
      %s22 = scalar_lea.vmem %s0, %s21
      %s23 = sadd.s32 0, 0
      %s24 = smul.u32 2, %s23
    $region5: #{tpu_custom_call.1} parent=1 // pred_fallthru
      _
    // Predicated region
    $region6: #{tpu_custom_call.1} parent=1 // pred_check
      _
    $region7: #{tpu_custom_call.1} parent=1 // pred_check_branch
      %26 = sbr.rel (0) target = $region9
    $region8: #{tpu_custom_call.1} parent=1 // pred_region
      %s27 = sadd.s32 0, 0
      %s28 = smul.u32 2, %s27
      %p29 = scmp.lt.s32.totalorder %s28, 1
      %s30 = scalar_select %p29, %s28, 1
      %s31 = smul.addr %s30, 8
      %s32 = scalar_lea.vmem %s1, %s31
      %s33 = sadd.s32 0, 0
      %s34 = smul.u32 2, %s33
    $region9: #{tpu_custom_call.1} parent=1 // pred_fallthru
      _
    // Predicated region
    $region10: #{tpu_custom_call.1} parent=1 // pred_check
      _
    $region11: #{tpu_custom_call.1} parent=1 // pred_check_branch
      %36 = sbr.rel (0) target = $region13
    $region12: #{tpu_custom_call.1} parent=1 // pred_region
      _
    $region13: #{tpu_custom_call.1} parent=1 // pred_fallthru
      _
    // Predicated region
    $region14: #{tpu_custom_call.1} parent=1 // pred_check
      _
    $region15: #{tpu_custom_call.1} parent=1 // pred_check_branch
      %38 = sbr.rel (0) target = $region17
    $region16: #{tpu_custom_call.1} parent=1 // pred_region
      _
    $region17: #{tpu_custom_call.1} parent=1 // pred_fallthru
      _
    // Predicated region
    $region18: #{tpu_custom_call.1} parent=1 // pred_check
      _
    $region19: #{tpu_custom_call.1} parent=1 // pred_check_branch
      %40 = sbr.rel (0) target = $region21
    $region20: #{tpu_custom_call.1} parent=1 // pred_region
      _
    $region21: #{tpu_custom_call.1} parent=1 // pred_fallthru
      _
    // Predicated region
    $region22: #{tpu_custom_call.1} parent=1 // pred_check
      _
    $region23: #{tpu_custom_call.1} parent=1 // pred_check_branch
      %42 = sbr.rel (0) target = $region25
    $region24: #{tpu_custom_call.1} parent=1 // pred_region
      _
    $region25: #{tpu_custom_call.1} parent=1 // pred_fallthru
      _
    // Predicated region
    $region26: #{tpu_custom_call.1} parent=1 // pred_check
      _
    $region27: #{tpu_custom_call.1} parent=1 // pred_check_branch
      %44 = sbr.rel (0) target = $region29
    $region28: #{tpu_custom_call.1} parent=1 // pred_region
      _
    $region29: #{tpu_custom_call.1} parent=1 // pred_fallthru
      _
    // Predicated region
    $region30: #{tpu_custom_call.1} parent=1 // pred_check
      _
    $region31: #{tpu_custom_call.1} parent=1 // pred_check_branch
      %46 = sbr.rel (0) target = $region33
    $region32: #{tpu_custom_call.1} parent=1 // pred_region
      _
    $region33: #{tpu_custom_call.1} parent=1 // pred_fallthru
      _
    // Predicated region
    $region34: #{tpu_custom_call.1} parent=1 // pred_check
      _
    $region35: #{tpu_custom_call.1} parent=1 // pred_check_branch
      %48 = sbr.rel (0) target = $region37
    $region36: #{tpu_custom_call.1} parent=1 // pred_region
      _
    $region37: #{tpu_custom_call.1} parent=1 // pred_fallthru
      _
    %s49 = sadd.s32 0, 0
    %s50 = smul.u32 2, %s49
    %p51 = scmp.lt.s32.totalorder %s50, 1
    %s52 = scalar_select %p51, %s50, 1
    %s53 = smul.addr %s52, 8
    %s54 = scalar_lea.vmem %s0, %s53
    %s55 = sadd.s32 0, 0
    %s56 = smul.u32 2, %s55
    %p57 = scmp.lt.s32.totalorder %s56, 1
    %s58 = scalar_select %p57, %s56, 1
    %s59 = smul.addr %s58, 8
    %s60 = scalar_lea.vmem %s1, %s59
    %s61 = sadd.s32 0, 0
    %s62 = smul.u32 2, %s61
    %p63 = scmp.lt.s32.totalorder %s62, 1
    %s64 = scalar_select %p63, %s62, 1
    %s65 = smul.addr %s64, 8
    %s66 = scalar_lea.vmem %s0, %s65
    %s67 = sadd.s32 0, 0
    %s68 = smul.u32 2, %s67
    %s69 = sadd.s32 0, 0
    %s70 = smul.u32 2, %s69
    %p71 = scmp.lt.s32.totalorder %s70, 1
    %s72 = scalar_select %p71, %s70, 1
    %s73 = smul.addr %s72, 8
    %s74 = scalar_lea.vmem %s1, %s73
    %s75 = sadd.s32 0, 0
    %s76 = smul.u32 2, %s75
    %p77 = scmp.eq.s32.totalorder 0, 0
    // Predicated region
    $region38: #{tpu_custom_call.1} parent=1 // pred_check
      %p78 = pneg %p77
    $region39: #{tpu_custom_call.1} parent=1 // pred_check_branch
      %80 = sbr.rel (%p78) target = $region41
    $region40: #{tpu_custom_call.1} parent=1 // pred_region
      %81 = vst [vmem:[#allocation2] sm:$0xff] 0.0
      %82 = vst [vmem:[#allocation2 + $0x8] sm:$0xff] 0.0
    $region41: #{tpu_custom_call.1} parent=1 // pred_fallthru
      _
    %v83 = vld [vmem:[%s66] sm:$0xff]
    %v84 = vld [vmem:[%s66 + $0x8] sm:$0xff]
    %v85 = vld [vmem:[%s74] sm:$0xff]
    %v86 = vld [vmem:[%s74 + $0x8] sm:$0xff]
    %v87 = vld [vmem:[%s2] sm:$0xff]
    %v88 = vld [vmem:[%s3] sm:$0xff]
    %90 = vset.pattern.permute.xlu0 0
    %91 = vperm.xlu0 %90, %v87
    %v92 = vpop.permute.xlu0 %91
    %v94 = vmul.f32 %v92, %v83
    %v95 = vmul.f32 %v92, %v84
    %97 = vset.pattern.permute.xlu0 0
    %98 = vperm.xlu0 %97, %v88
    %v99 = vpop.permute.xlu0 %98
    %v101 = vmul.f32 %v99, %v85
    %v102 = vmul.f32 %v99, %v86
    %v103 = vadd.f32 %v94, %v101
    %v104 = vadd.f32 %v95, %v102
    %v105 = vmul.f32 %v92, %v85
    %v106 = vmul.f32 %v92, %v86
    %v107 = vmul.f32 %v99, %v83
    %v108 = vmul.f32 %v99, %v84
    %v109 = vsub.f32 %v105, %v107
    %v110 = vsub.f32 %v106, %v108
    %v111 = vld [vmem:[%s6] sm:$0xff]
    %v112 = vld [vmem:[%s6 + $0x8] sm:$0xff]
    %v113 = vld [vmem:[%s6 + $0x10] sm:$0xff]
    %v114 = vld [vmem:[%s6 + $0x18] sm:$0xff]
    %v115 = vld [vmem:[%s6 + $0x20] sm:$0xff]
    %v116 = vld [vmem:[%s6 + $0x28] sm:$0xff]
    %v117 = vld [vmem:[%s6 + $0x30] sm:$0xff]
    %v118 = vld [vmem:[%s6 + $0x38] sm:$0xff]
    %v119 = vld [vmem:[%s5] sm:$0xff]
    %v120 = vld [vmem:[%s5 + $0x8] sm:$0xff]
    %v121 = vld [vmem:[%s5 + $0x10] sm:$0xff]
    %v122 = vld [vmem:[%s5 + $0x18] sm:$0xff]
    %v123 = vld [vmem:[%s5 + $0x20] sm:$0xff]
    %v124 = vld [vmem:[%s5 + $0x28] sm:$0xff]
    %v125 = vld [vmem:[%s5 + $0x30] sm:$0xff]
    %v126 = vld [vmem:[%s5 + $0x38] sm:$0xff]
    %128 = vset.pattern.permute.xlu0 0
    %129 = vperm.xlu0 %128, %v119
    %v130 = vpop.permute.xlu0 %129
    %133 = vset.pattern.permute.xlu0 0
    %134 = vperm.xlu0 %133, %v120
    %v135 = vpop.permute.xlu0 %134
    %138 = vset.pattern.permute.xlu0 0
    %139 = vperm.xlu0 %138, %v121
    %v140 = vpop.permute.xlu0 %139
    %143 = vset.pattern.permute.xlu0 0
    %144 = vperm.xlu0 %143, %v122
    %v145 = vpop.permute.xlu0 %144
    %148 = vset.pattern.permute.xlu0 0
    %149 = vperm.xlu0 %148, %v123
    %v150 = vpop.permute.xlu0 %149
    %153 = vset.pattern.permute.xlu0 0
    %154 = vperm.xlu0 %153, %v124
    %v155 = vpop.permute.xlu0 %154
    %158 = vset.pattern.permute.xlu0 0
    %159 = vperm.xlu0 %158, %v125
    %v160 = vpop.permute.xlu0 %159
    %163 = vset.pattern.permute.xlu0 0
    %164 = vperm.xlu0 %163, %v126
    %v165 = vpop.permute.xlu0 %164
    %vm167 = vcmask 64512
    %v169 = vsel %vm167, %v111, 0
    %v172 = vsel %vm167, %v112, 0
    %v175 = vsel %vm167, %v113, 0
    %v178 = vsel %vm167, %v114, 0
    %v181 = vsel %vm167, %v115, 0
    %v184 = vsel %vm167, %v116, 0
    %v187 = vsel %vm167, %v117, 0
    %v190 = vsel %vm167, %v118, 0
    %192 = vmatprep.subr.mxu0 0.0
    %193 = vmatpush1.msra.mxu0 0.0
    %194 = vmatprep.subr.mxu0 0.0
    %195 = vmatpush1.msra.mxu0 0.0
    %196 = vmatprep.subr.mxu0 0.0
    %197 = vmatpush1.msra.mxu0 0.0
    %198 = vmatprep.subr.mxu0 0.0
    %199 = vmatpush1.msra.mxu0 0.0
    %200 = vmatprep.subr.mxu0 0.0
    %201 = vmatpush1.msra.mxu0 0.0
    %202 = vmatprep.subr.mxu0 0.0
    %203 = vmatpush1.msra.mxu0 0.0
    %204 = vmatprep.subr.mxu0 0.0
    %205 = vmatpush1.msra.mxu0 0.0
    %206 = vmatprep.subr.mxu0 0.0
    %207 = vmatpush1.msra.mxu0 0.0
    %208 = vmatprep.subr.mxu0 0.0
    %209 = vmatpush1.msra.mxu0 0.0
    %210 = vmatprep.subr.mxu0 0.0
    %211 = vmatpush1.msra.mxu0 0.0
    %212 = vmatprep.subr.mxu0 0.0
    %213 = vmatpush1.msra.mxu0 0.0
    %214 = vmatprep.subr.mxu0 0.0
    %215 = vmatpush1.msra.mxu0 0.0
    %216 = vmatprep.subr.mxu0 0.0
    %217 = vmatpush1.msra.mxu0 0.0
    %218 = vmatprep.subr.mxu0 0.0
    %219 = vmatpush1.msra.mxu0 0.0
    %220 = vmatprep.subr.mxu0 0.0
    %221 = vmatpush1.msra.mxu0 0.0
    %222 = vmatprep.subr.mxu0 %v104
    %223 = vmatpush1.msra.mxu0 %v103
    %224 = vmatprep.subr.mxu0 0.0
    %225 = vmatpush2.msra.mxu0 0.0
    %226 = vmatprep.subr.mxu0 0.0
    %227 = vmatpush2.msra.mxu0 0.0
    %228 = vmatprep.subr.mxu0 0.0
    %229 = vmatpush2.msra.mxu0 0.0
    %230 = vmatprep.subr.mxu0 0.0
    %231 = vmatpush2.msra.mxu0 0.0
    %232 = vmatprep.subr.mxu0 0.0
    %233 = vmatpush2.msra.mxu0 0.0
    %234 = vmatprep.subr.mxu0 0.0
    %235 = vmatpush2.msra.mxu0 0.0
    %236 = vmatprep.subr.mxu0 0.0
    %237 = vmatpush2.msra.mxu0 0.0
    %238 = vmatprep.subr.mxu0 0.0
    %239 = vmatpush2.msra.mxu0 0.0
    %240 = vmatprep.subr.mxu0 0.0
    %241 = vmatpush2.msra.mxu0 0.0
    %242 = vmatprep.subr.mxu0 0.0
    %243 = vmatpush2.msra.mxu0 0.0
    %244 = vmatprep.subr.mxu0 0.0
    %245 = vmatpush2.msra.mxu0 0.0
    %246 = vmatprep.subr.mxu0 0.0
    %247 = vmatpush2.msra.mxu0 0.0
    %248 = vmatprep.subr.mxu0 0.0
    %249 = vmatpush2.msra.mxu0 0.0
    %250 = vmatprep.subr.mxu0 0.0
    %251 = vmatpush2.msra.mxu0 0.0
    %252 = vmatprep.subr.mxu0 0.0
    %253 = vmatpush2.msra.mxu0 0.0
    %254 = vmatprep.subr.mxu0 0.0
    %255 = vmatpush2.msra.mxu0 0.0
    %256 = vmatprep.mubr.f32.mxu0 0.0
    %257 = vmatmul.mubr.f32.gmra.mxu0 %v169
    %v258 = vpop.f32.mrf.mxu0
    %v259 = vadd.f32 %v130, %v258
    %v260 = vpop.f32.mrf.mxu0
    %v261 = vadd.f32 %v130, %v260
    %262 = vmatprep.mubr.f32.mxu0 0.0
    %263 = vmatmul.mubr.f32.gmra.mxu0 %v172
    %v264 = vpop.f32.mrf.mxu0
    %v265 = vadd.f32 %v135, %v264
    %v266 = vpop.f32.mrf.mxu0
    %v267 = vadd.f32 %v135, %v266
    %268 = vmatprep.mubr.f32.mxu0 0.0
    %269 = vmatmul.mubr.f32.gmra.mxu0 %v175
    %v270 = vpop.f32.mrf.mxu0
    %v271 = vadd.f32 %v140, %v270
    %v272 = vpop.f32.mrf.mxu0
    %v273 = vadd.f32 %v140, %v272
    %274 = vmatprep.mubr.f32.mxu0 0.0
    %275 = vmatmul.mubr.f32.gmra.mxu0 %v178
    %v276 = vpop.f32.mrf.mxu0
    %v277 = vadd.f32 %v145, %v276
    %v278 = vpop.f32.mrf.mxu0
    %v279 = vadd.f32 %v145, %v278
    %280 = vmatprep.mubr.f32.mxu0 0.0
    %281 = vmatmul.mubr.f32.gmra.mxu0 %v181
    %v282 = vpop.f32.mrf.mxu0
    %v283 = vadd.f32 %v150, %v282
    %v284 = vpop.f32.mrf.mxu0
    %v285 = vadd.f32 %v150, %v284
    %286 = vmatprep.mubr.f32.mxu0 0.0
    %287 = vmatmul.mubr.f32.gmra.mxu0 %v184
    %v288 = vpop.f32.mrf.mxu0
    %v289 = vadd.f32 %v155, %v288
    %v290 = vpop.f32.mrf.mxu0
    %v291 = vadd.f32 %v155, %v290
    %292 = vmatprep.mubr.f32.mxu0 0.0
    %293 = vmatmul.mubr.f32.gmra.mxu0 %v187
    %v294 = vpop.f32.mrf.mxu0
    %v295 = vadd.f32 %v160, %v294
    %v296 = vpop.f32.mrf.mxu0
    %v297 = vadd.f32 %v160, %v296
    %298 = vmatprep.mubr.f32.mxu0 0.0
    %299 = vmatmul.mubr.f32.gmra.mxu0 %v190
    %v300 = vpop.f32.mrf.mxu0
    %v301 = vadd.f32 %v165, %v300
    %v302 = vpop.f32.mrf.mxu0
    %v303 = vadd.f32 %v165, %v302
    %304 = vdwg.mxu0
    %v305 = vtanh.pop %v259
    %v306 = vtanh.pop %v261
    %v307 = vtanh.pop %v265
    %v308 = vtanh.pop %v267
    %v309 = vtanh.pop %v271
    %v310 = vtanh.pop %v273
    %v311 = vtanh.pop %v277
    %v312 = vtanh.pop %v279
    %v313 = vtanh.pop %v283
    %v314 = vtanh.pop %v285
    %v315 = vtanh.pop %v289
    %v316 = vtanh.pop %v291
    %v317 = vtanh.pop %v295
    %v318 = vtanh.pop %v297
    %v319 = vtanh.pop %v301
    %v320 = vtanh.pop %v303
    %v321 = vld [vmem:[%s7] sm:$0xff]
    %v322 = vld [vmem:[%s8] sm:$0xff]
    %324 = vset.pattern.permute.xlu0 0
    %325 = vperm.xlu0 %324, %v322
    %v326 = vpop.permute.xlu0 %325
    %vm328 = vcmask 523264
    %v330 = vsel %vm328, %v321, 0
    %332 = vmatprep.subr.mxu0 0.0
    %333 = vmatpush1.msra.mxu0 0.0
    %334 = vmatprep.subr.mxu0 0.0
    %335 = vmatpush1.msra.mxu0 0.0
    %336 = vmatprep.subr.mxu0 0.0
    %337 = vmatpush1.msra.mxu0 0.0
    %338 = vmatprep.subr.mxu0 0.0
    %339 = vmatpush1.msra.mxu0 0.0
    %340 = vmatprep.subr.mxu0 0.0
    %341 = vmatpush1.msra.mxu0 0.0
    %342 = vmatprep.subr.mxu0 0.0
    %343 = vmatpush1.msra.mxu0 0.0
    %344 = vmatprep.subr.mxu0 0.0
    %345 = vmatpush1.msra.mxu0 0.0
    %346 = vmatprep.subr.mxu0 0.0
    %347 = vmatpush1.msra.mxu0 0.0
    %348 = vmatprep.subr.mxu0 %v320
    %349 = vmatpush1.msra.mxu0 %v319
    %350 = vmatprep.subr.mxu0 %v318
    %351 = vmatpush1.msra.mxu0 %v317
    %352 = vmatprep.subr.mxu0 %v316
    %353 = vmatpush1.msra.mxu0 %v315
    %354 = vmatprep.subr.mxu0 %v314
    %355 = vmatpush1.msra.mxu0 %v313
    %356 = vmatprep.subr.mxu0 %v312
    %357 = vmatpush1.msra.mxu0 %v311
    %358 = vmatprep.subr.mxu0 %v310
    %359 = vmatpush1.msra.mxu0 %v309
    %360 = vmatprep.subr.mxu0 %v308
    %361 = vmatpush1.msra.mxu0 %v307
    %362 = vmatprep.subr.mxu0 %v306
    %363 = vmatpush1.msra.mxu0 %v305
    %364 = vmatprep.subr.mxu0 0.0
    %365 = vmatpush2.msra.mxu0 0.0
    %366 = vmatprep.subr.mxu0 0.0
    %367 = vmatpush2.msra.mxu0 0.0
    %368 = vmatprep.subr.mxu0 0.0
    %369 = vmatpush2.msra.mxu0 0.0
    %370 = vmatprep.subr.mxu0 0.0
    %371 = vmatpush2.msra.mxu0 0.0
    %372 = vmatprep.subr.mxu0 0.0
    %373 = vmatpush2.msra.mxu0 0.0
    %374 = vmatprep.subr.mxu0 0.0
    %375 = vmatpush2.msra.mxu0 0.0
    %376 = vmatprep.subr.mxu0 0.0
    %377 = vmatpush2.msra.mxu0 0.0
    %378 = vmatprep.subr.mxu0 0.0
    %379 = vmatpush2.msra.mxu0 0.0
    %380 = vmatprep.subr.mxu0 0.0
    %381 = vmatpush2.msra.mxu0 0.0
    %382 = vmatprep.subr.mxu0 0.0
    %383 = vmatpush2.msra.mxu0 0.0
    %384 = vmatprep.subr.mxu0 0.0
    %385 = vmatpush2.msra.mxu0 0.0
    %386 = vmatprep.subr.mxu0 0.0
    %387 = vmatpush2.msra.mxu0 0.0
    %388 = vmatprep.subr.mxu0 0.0
    %389 = vmatpush2.msra.mxu0 0.0
    %390 = vmatprep.subr.mxu0 0.0
    %391 = vmatpush2.msra.mxu0 0.0
    %392 = vmatprep.subr.mxu0 0.0
    %393 = vmatpush2.msra.mxu0 0.0
    %394 = vmatprep.subr.mxu0 0.0
    %395 = vmatpush2.msra.mxu0 0.0
    %396 = vmatprep.mubr.f32.mxu0 0.0
    %397 = vmatmul.mubr.f32.gmra.mxu0 %v330
    %v398 = vpop.f32.mrf.mxu0
    %v399 = vadd.f32 %v326, %v398
    %v400 = vpop.f32.mrf.mxu0
    %v401 = vadd.f32 %v326, %v400
    %402 = vdwg.mxu0
    %v403 = vsub.f32 %v399, %v109
    %v404 = vsub.f32 %v401, %v110
    %v405 = vmul.f32 %v403, %v403
    %v406 = vmul.f32 %v404, %v404
    %v407 = vld [vmem:[#allocation2] sm:$0xff]
    %v408 = vld [vmem:[#allocation2 + $0x8] sm:$0xff]
    %v409 = vadd.f32 %v407, %v405
    %v410 = vadd.f32 %v408, %v406
    %411 = vst [vmem:[#allocation2] sm:$0xff] %v409
    %412 = vst [vmem:[#allocation2 + $0x8] sm:$0xff] %v410
    // Predicated region
    $region42: #{tpu_custom_call.1} parent=1 // pred_check
      %p413 = pneg %p77
    $region43: #{tpu_custom_call.1} parent=1 // pred_check_branch
      %415 = sbr.rel (%p413) target = $region45
    $region44: #{tpu_custom_call.1} parent=1 // pred_region
      %v416 = vld [vmem:[#allocation2] sm:$0xff]
      %v417 = vld [vmem:[#allocation2 + $0x8] sm:$0xff]
      %v418 = vadd.f32 %v416, %v417
      %419 = vadd.xlane.f32.xlu0 %v418
      %v420 = vpop.xlane.xlu0 %419
      %v421 = vrot.slane %v420, 4
      %v422 = vadd.f32 %v420, %v421
      %v423 = vrot.slane %v422, 2
      %v424 = vadd.f32 %v422, %v423
      %v425 = vrot.slane %v424, 1
      %v426 = vadd.f32 %v424, %v425
      %s427 = vtos %v426
      %v428 = vstv %s427
      %429 = vst [vmem:[#allocation3] sm:$0xff] %v428
    $region45: #{tpu_custom_call.1} parent=1 // pred_fallthru
      _
    // Predicated region
    $region46: #{tpu_custom_call.1} parent=1 // pred_check
      _
    $region47: #{tpu_custom_call.1} parent=1 // pred_check_branch
      %431 = sbr.rel (0) target = $region49
    $region48: #{tpu_custom_call.1} parent=1 // pred_region
      %s433 = ssub.s32 128, 128
      %434 = vsyncadd [#allocation4], %s433
      %s436 = sshll.u32 [#allocation3], 4
      %s437 = int_to_ptr.vmem [resolvable:$true] %s436
      %439 = dma.vmem_to_hbm [thread:$0]  %s437, 128, %s9, [#allocation4]
    $region49: #{tpu_custom_call.1} parent=1 // pred_fallthru
      _
    // Predicated region
    $region50: #{tpu_custom_call.1} parent=1 // pred_check
      _
    $region51: #{tpu_custom_call.1} parent=1 // pred_check_branch
      %441 = sbr.rel (0) target = $region53
    $region52: #{tpu_custom_call.1} parent=1 // pred_region
      %442 = dma.done [#allocation4], 128
    $region53: #{tpu_custom_call.1} parent=1 // pred_fallthru
      _
    %443 = vsyncpa [#allocation4], 1

</llo_original>
